<compile_context>
chip_gen: v5e
topology: v5e:2x2
jax: 0.10.0
libtpu: 0.0.40
codegen_flags: <defaults>
</compile_context>

<pallas_src>
import jax
import jax.numpy as jnp
from jax.experimental import pallas as pl
from jax.experimental.pallas import tpu as pltpu


def _round_down(x, m):
    return (x // m) * m


def _round_up(x, m):
    return ((x + m - 1) // m) * m


def _device_kind():
    try:
        return jax.devices()[0].device_kind.lower()
    except Exception:
        return ""


def _vmem_capacity_bytes(device_kind):
    """Per-core VMEM capacity (64 MiB on v7x, 128 MiB on v5e/v6e)."""
    try:
        return int(pltpu.get_tpu_info().vmem_capacity_bytes)
    except Exception:
        # Keyed fallback so v5e/v6e keep their full 128 MiB budget instead of
        # silently halving it (review note).
        if ("v5" in device_kind) or ("v6" in device_kind):
            return 128 << 20
        return 64 << 20


_TARGET_BLOCK_BYTES = 8 << 20   # ~6-8 MiB blocks: per-step overhead <5% on v7x
_MIN_BLOCK_BYTES = 1 << 20


def _conv_du(pooled, w1t_ref, b1_ref, w2t_ref, b2_ref):
    """sigmoid(W2 @ relu(W1 @ pooled + b1) + b2) on (rows, C) pooled values.

    Small MXU matmuls against pre-transposed weights; avoids the lane-sparse
    (rows, C, Cr) broadcast temporary flagged in the review.
    """
    h = jnp.dot(pooled, w1t_ref[...], preferred_element_type=jnp.float32)
    h = jnp.maximum(h + b1_ref[...], 0.0)                          # (rows, Cr)
    y = jnp.dot(h, w2t_ref[...], preferred_element_type=jnp.float32)
    return jax.nn.sigmoid(y + b2_ref[...])                         # (rows, C)


# ---------------------------------------------------------------------------
# Fused single-pass kernel: pool + conv_du + rescale on one (nb, C, HW) block.
# ---------------------------------------------------------------------------
def _ca_fused_kernel(x_ref, w1t_ref, b1_ref, w2t_ref, b2_ref, o_ref):
    hw = x_ref.shape[-1]
    # AdaptiveAvgPool2d(1): mean over the flattened spatial (lane) axis (f32).
    pooled = jnp.sum(x_ref[...].astype(jnp.float32), axis=-1) * (1.0 / hw)
    y = _conv_du(pooled, w1t_ref, b1_ref, w2t_ref, b2_ref)          # (nb, C)
    o_ref[...] = (x_ref[...].astype(jnp.float32) * y[:, :, None]).astype(o_ref.dtype)


def _ca_fused(x_flat, w1t, b1_row, w2t, b2_row, *, block_budget, vmem_limit,
              is_v7x, batch_block=None):
    N, C, HW = x_flat.shape
    Cr = w1t.shape[1]
    slab_bytes = C * HW * x_flat.dtype.itemsize

    if batch_block is not None:
        nb = max(1, min(int(batch_block), N))          # explicit override
    else:
        # As many slabs as fit the VMEM block budget, targeting ~8 MiB blocks.
        nb = max(1, min(block_budget // slab_bytes,
                        max(1, _TARGET_BLOCK_BYTES // slab_bytes),
                        N))
        # Generation-aware grid floor: on v7x keep >=2 (prefer 4) grid steps so
        # both TensorCores stream; on v5e/v6e only trade block size for step
        # count if blocks stay >= ~1 MiB.
        if N >= 2:
            min_steps = 4 if is_v7x else 2
            nb_floor = max(1, N // min(min_steps, N))
            if is_v7x or nb_floor * slab_bytes >= _MIN_BLOCK_BYTES:
                nb = min(nb, nb_floor)

    grid = pl.cdiv(N, nb)   # no exact-divisibility requirement; last block clipped
    return pl.pallas_call(
        _ca_fused_kernel,
        out_shape=jax.ShapeDtypeStruct((N, C, HW), x_flat.dtype),
        grid_spec=pltpu.PrefetchScalarGridSpec(
            num_scalar_prefetch=0,
            grid=(grid,),
            in_specs=[
                pl.BlockSpec((nb, C, HW), lambda n: (n, 0, 0)),
                pl.BlockSpec((C, Cr), lambda n: (0, 0)),
                pl.BlockSpec((1, Cr), lambda n: (0, 0)),
                pl.BlockSpec((Cr, C), lambda n: (0, 0)),
                pl.BlockSpec((1, C), lambda n: (0, 0)),
            ],
            out_specs=pl.BlockSpec((nb, C, HW), lambda n: (n, 0, 0)),
        ),
        compiler_params=pltpu.CompilerParams(
            dimension_semantics=("parallel",),
            vmem_limit_bytes=vmem_limit),
    )(x_flat, w1t, b1_row, w2t, b2_row)


# ---------------------------------------------------------------------------
# Manual single-buffered path: one (1, C, HW) slab live in VMEM, read x once.
# Used when a slab is too big for double-buffered fused blocks but fits VMEM.
# ---------------------------------------------------------------------------
def _ca_single_buffer(x_flat, w1t, b1_row, w2t, b2_row, *, vmem_limit):
    N, C, HW = x_flat.shape
    Cr = w1t.shape[1]
    out_dtype = x_flat.dtype

    def kernel(x_hbm, w1t_ref, b1_ref, w2t_ref, b2_ref, o_hbm, buf, sems):
        n = pl.program_id(0)
        cp_in = pltpu.make_async_copy(x_hbm.at[pl.ds(n, 1)], buf, sems.at[0])
        cp_in.start()
        cp_in.wait()
        pooled = jnp.sum(buf[...].astype(jnp.float32), axis=-1) * (1.0 / HW)
        y = _conv_du(pooled, w1t_ref, b1_ref, w2t_ref, b2_ref)      # (1, C)
        buf[...] = (buf[...].astype(jnp.float32) * y[:, :, None]).astype(out_dtype)
        cp_out = pltpu.make_async_copy(buf, o_hbm.at[pl.ds(n, 1)], sems.at[1])
        cp_out.start()
        cp_out.wait()

    return pl.pallas_call(
        kernel,
        out_shape=jax.ShapeDtypeStruct((N, C, HW), out_dtype),
        grid_spec=pltpu.PrefetchScalarGridSpec(
            num_scalar_prefetch=0,
            grid=(N,),
            in_specs=[
                pl.BlockSpec(memory_space=pl.ANY),
                pl.BlockSpec((C, Cr), lambda n: (0, 0)),
                pl.BlockSpec((1, Cr), lambda n: (0, 0)),
                pl.BlockSpec((Cr, C), lambda n: (0, 0)),
                pl.BlockSpec((1, C), lambda n: (0, 0)),
            ],
            out_specs=pl.BlockSpec(memory_space=pl.ANY),
            scratch_shapes=[
                pltpu.VMEM((1, C, HW), out_dtype),
                pltpu.SemaphoreType.DMA((2,)),
            ],
        ),
        compiler_params=pltpu.CompilerParams(
            dimension_semantics=("parallel",),
            vmem_limit_bytes=vmem_limit),
    )(x_flat, w1t, b1_row, w2t, b2_row)


# ---------------------------------------------------------------------------
# Two-pass path for very large H*W: (1) streamed pool + tiny FCs -> scale,
# (2) streamed x * scale.
# ---------------------------------------------------------------------------
def _ca_two_pass(x_flat, w1t, b1_row, w2t, b2_row, *, vmem_limit,
                 max_hw_tile=None):
    N, C, HW = x_flat.shape
    Cr = w1t.shape[1]
    itemsize = x_flat.dtype.itemsize

    def pick_tile(per_block_budget):
        cap = max(128, _round_down(per_block_budget // (C * itemsize), 128))
        if max_hw_tile is not None:
            cap = min(cap, max(128, _round_down(max_hw_tile, 128)))
        return min(cap, _round_up(HW, 128))

    # Pass 1 only double-buffers its input (its output is a tiny (1, C, 1)),
    # so its tile gets ~2x the per-block budget of pass 2.
    hw_tile1 = pick_tile(int(vmem_limit / 2.2))
    hw_tile2 = pick_tile(int(vmem_limit / 4.3))
    num1 = pl.cdiv(HW, hw_tile1)
    num2 = pl.cdiv(HW, hw_tile2)
    rem1 = HW % hw_tile1   # static

    # ---- Pass 1: pooled sum (tail-only mask) + conv_du -> scale (N, C, 1) ----
    def pool_kernel(x_ref, w1t_ref, b1_ref, w2t_ref, b2_ref, y_ref, acc_ref):
        j = pl.program_id(1)

        @pl.when(j == 0)
        def _():
            acc_ref[...] = jnp.zeros_like(acc_ref)

        if rem1 == 0:
            # Steady state: plain sum, no per-element masking.
            acc_ref[...] += jnp.sum(x_ref[...].astype(jnp.float32), axis=-1)
        else:
            @pl.when(j < pl.num_programs(1) - 1)
            def _():
                acc_ref[...] += jnp.sum(x_ref[...].astype(jnp.float32), axis=-1)

            @pl.when(j == pl.num_programs(1) - 1)
            def _():
                lane = jax.lax.broadcasted_iota(jnp.int32, (1, 1, hw_tile1), 2)
                xblk = jnp.where(lane < rem1,
                                 x_ref[...].astype(jnp.float32), 0.0)
                acc_ref[...] += jnp.sum(xblk, axis=-1)

        @pl.when(j == pl.num_programs(1) - 1)
        def _():
            pooled = acc_ref[...] * (1.0 / HW)                        # (1, C)
            y = _conv_du(pooled, w1t_ref, b1_ref, w2t_ref, b2_ref)    # (1, C)
            y_ref[...] = y[:, :, None]                                # (1, C, 1)

    y_scale = pl.pallas_call(
        pool_kernel,
        out_shape=jax.ShapeDtypeStruct((N, C, 1), jnp.float32),
        grid_spec=pltpu.PrefetchScalarGridSpec(
            num_scalar_prefetch=0,
            grid=(N, num1),
            in_specs=[
                pl.BlockSpec((1, C, hw_tile1), lambda i, j: (i, 0, j)),
                pl.BlockSpec((C, Cr), lambda i, j: (0, 0)),
                pl.BlockSpec((1, Cr), lambda i, j: (0, 0)),
                pl.BlockSpec((Cr, C), lambda i, j: (0, 0)),
                pl.BlockSpec((1, C), lambda i, j: (0, 0)),
            ],
            out_specs=pl.BlockSpec((1, C, 1), lambda i, j: (i, 0, 0)),
            scratch_shapes=[pltpu.VMEM((1, C), jnp.float32)],
        ),
        compiler_params=pltpu.CompilerParams(
            dimension_semantics=("parallel", "arbitrary"),
            vmem_limit_bytes=vmem_limit),
    )(x_flat, w1t, b1_row, w2t, b2_row)

    # ---- Pass 2: streamed rescale x * scale (all-parallel grid) ----
    def rescale_kernel(x_ref, y_ref, o_ref):
        o_ref[...] = (x_ref[...].astype(jnp.float32) * y_ref[...]).astype(o_ref.dtype)

    return pl.pallas_call(
        rescale_kernel,
        out_shape=jax.ShapeDtypeStruct((N, C, HW), x_flat.dtype),
        grid_spec=pltpu.PrefetchScalarGridSpec(
            num_scalar_prefetch=0,
            grid=(N, num2),
            in_specs=[
                pl.BlockSpec((1, C, hw_tile2), lambda i, j: (i, 0, j)),
                pl.BlockSpec((1, C, 1), lambda i, j: (i, 0, 0)),
            ],
            out_specs=pl.BlockSpec((1, C, hw_tile2), lambda i, j: (i, 0, j)),
        ),
        compiler_params=pltpu.CompilerParams(
            dimension_semantics=("parallel", "parallel"),
            vmem_limit_bytes=vmem_limit),
    )(x_flat, y_scale)


# ---------------------------------------------------------------------------
# Public wrapper
# ---------------------------------------------------------------------------
def ca_layer(x, w1, b1, w2, b2, *, force_two_pass=False,
             force_single_buffer=False, max_hw_tile=None, batch_block=None):
    """Channel-attention forward (matches CALayer.forward).

    x:  (N, C, H, W), f32 or bf16.  Passing bf16 halves HBM traffic; the
        pooling / conv_du / scale math always runs in f32; output is x.dtype.
    w1: (C//r, C), b1: (C//r,)  -- first 1x1 conv
    w2: (C, C//r), b2: (C,)     -- second 1x1 conv
    """
    N, C, H, W = x.shape
    Cr = w1.shape[0]
    HW = H * W

    x_flat = x.reshape(N, C, HW)
    # Pre-transposed weights so the in-kernel FCs are (rows,C)@(C,Cr) and
    # (rows,Cr)@(Cr,C) MXU matmuls with the channel dim lane-dense.
    w1t = jnp.asarray(w1, jnp.float32).T               # (C, Cr)
    w2t = jnp.asarray(w2, jnp.float32).T               # (Cr, C)
    b1_row = jnp.asarray(b1, jnp.float32).reshape(1, Cr)
    b2_row = jnp.asarray(b2, jnp.float32).reshape(1, C)

    kind = _device_kind()
    is_v7x = ("v7" in kind) or ("tpu7" in kind)
    vmem_cap = _vmem_capacity_bytes(kind)
    vmem_limit = max(16 << 20, min(int(vmem_cap * 0.75), vmem_cap - (4 << 20)))

    # Fused path double-buffers input + output (4x block) plus headroom;
    # manual single-buffer path only holds one slab live.
    fused_block_budget = int(vmem_limit / 4.3)
    single_buf_budget = int(vmem_limit * 0.8)

    slab_bytes = C * HW * x_flat.dtype.itemsize
    if force_two_pass:
        out_flat = _ca_two_pass(x_flat, w1t, b1_row, w2t, b2_row,
                                vmem_limit=vmem_limit, max_hw_tile=max_hw_tile)
    elif (not force_single_buffer) and slab_bytes <= fused_block_budget:
        out_flat = _ca_fused(x_flat, w1t, b1_row, w2t, b2_row,
                             block_budget=fused_block_budget,
                             vmem_limit=vmem_limit, is_v7x=is_v7x,
                             batch_block=batch_block)
    elif force_single_buffer or slab_bytes <= single_buf_budget:
        out_flat = _ca_single_buffer(x_flat, w1t, b1_row, w2t, b2_row,
                                     vmem_limit=vmem_limit)
    else:
        out_flat = _ca_two_pass(x_flat, w1t, b1_row, w2t, b2_row,
                                vmem_limit=vmem_limit, max_hw_tile=max_hw_tile)
    return out_flat.reshape(N, C, H, W)


def ca_layer_ref(x, w1, b1, w2, b2):
    """Plain-JAX reference matching the PyTorch forward (f32 math)."""
    xf = x.astype(jnp.float32)
    y = jnp.mean(xf, axis=(2, 3), keepdims=True)               # (N, C, 1, 1)
    y = jnp.einsum("oc,nchw->nohw", w1, y) + b1[None, :, None, None]
    y = jnp.maximum(y, 0.0)
    y = jnp.einsum("oc,nchw->nohw", w2, y) + b2[None, :, None, None]
    y = jax.nn.sigmoid(y)
    return xf * y


if __name__ == "__main__":
    # channel must be divisible by reduction=16 -> C=64 (C//r = 4)
    C, reduction = 64, 16
    Cr = C // reduction

    key = jax.random.PRNGKey(0)
    kx1, kx2, kx3, k1, k2, k3, k4 = jax.random.split(key, 7)

    w1 = jax.random.normal(k1, (Cr, C), dtype=jnp.float32) * 0.1
    b1 = jax.random.normal(k2, (Cr,), dtype=jnp.float32) * 0.1
    w2 = jax.random.normal(k3, (C, Cr), dtype=jnp.float32) * 0.1
    b2 = jax.random.normal(k4, (C,), dtype=jnp.float32) * 0.1

    # 1) Fused single-pass path; N=5 with batch_block=2 forces a cdiv grid
    #    with a clipped (padded) final batch block.
    x1 = jax.random.normal(kx1, (5, C, 16, 16), dtype=jnp.float32)
    out1 = jax.block_until_ready(ca_layer(x1, w1, b1, w2, b2, batch_block=2))
    ref1 = ca_layer_ref(x1, w1, b1, w2, b2)
    assert out1.shape == x1.shape
    assert jnp.allclose(out1, ref1, atol=1e-5, rtol=1e-5)

    # 1b) bf16 I/O mode (halves streamed HBM bytes; internal math stays f32).
    x1b = x1.astype(jnp.bfloat16)
    out1b = jax.block_until_ready(ca_layer(x1b, w1, b1, w2, b2))
    ref1b = ca_layer_ref(x1b, w1, b1, w2, b2)
    assert out1b.dtype == jnp.bfloat16
    assert jnp.allclose(out1b.astype(jnp.float32), ref1b, atol=3e-2, rtol=3e-2)

    # 2) Two-pass streaming path (forced): H*W=288 with 128-wide hw tiles
    #    exercises cross-tile accumulation + the last-tile-only masked sum.
    x2 = jax.random.normal(kx2, (2, C, 16, 18), dtype=jnp.float32)
    out2 = jax.block_until_ready(
        ca_layer(x2, w1, b1, w2, b2, force_two_pass=True, max_hw_tile=128))
    ref2 = ca_layer_ref(x2, w1, b1, w2, b2)
    assert out2.shape == x2.shape
    assert jnp.allclose(out2, ref2, atol=1e-5, rtol=1e-5)

    # 3) Manual single-buffered path (forced): read-x-once fallback for slabs
    #    too large for double-buffered fused blocks.
    x3 = jax.random.normal(kx3, (3, C, 16, 16), dtype=jnp.float32)
    out3 = jax.block_until_ready(
        ca_layer(x3, w1, b1, w2, b2, force_single_buffer=True))
    ref3 = ca_layer_ref(x3, w1, b1, w2, b2)
    assert out3.shape == x3.shape
    assert jnp.allclose(out3, ref3, atol=1e-5, rtol=1e-5)

    print("KERNEL_OK")
</pallas_src>

<mosaic_0001>
module attributes {stable_mosaic.version = 11 : i64} {
  func.func @_ca_fused_kernel(%arg0: i32, %arg1: memref<2x64x256xf32, #tpu.memory_space<vmem>>, %arg2: memref<64x4xf32, #tpu.memory_space<vmem>>, %arg3: memref<1x4xf32, #tpu.memory_space<vmem>>, %arg4: memref<4x64xf32, #tpu.memory_space<vmem>>, %arg5: memref<1x64xf32, #tpu.memory_space<vmem>>, %arg6: memref<2x64x256xf32, #tpu.memory_space<vmem>>) attributes {dimension_semantics = [#tpu.dimension_semantics<parallel>], iteration_bounds = array<i64: 3>, scalar_prefetch = 0 : i64, scratch_operands = 0 : i64, tpu.core_type = #tpu.core_type<tc>, window_params = [{transform_indices = @transform_0, window_bounds = array<i64: 2, 64, 256>}, {pipeline_mode = #tpu.pipeline_mode<synchronous>, transform_indices = @transform_1, window_bounds = array<i64: 64, 4>}, {pipeline_mode = #tpu.pipeline_mode<synchronous>, transform_indices = @transform_2, window_bounds = array<i64: 1, 4>}, {pipeline_mode = #tpu.pipeline_mode<synchronous>, transform_indices = @transform_3, window_bounds = array<i64: 4, 64>}, {pipeline_mode = #tpu.pipeline_mode<synchronous>, transform_indices = @transform_4, window_bounds = array<i64: 1, 64>}, {transform_indices = @transform_5, window_bounds = array<i64: 2, 64, 256>}]} {
    %c0 = arith.constant 0 : index
    %c0_0 = arith.constant 0 : index
    %c0_1 = arith.constant 0 : index
    %0 = vector.load %arg1[%c0, %c0_0, %c0_1] : memref<2x64x256xf32, #tpu.memory_space<vmem>>, vector<2x64x256xf32>
    %cst = arith.constant dense<0.000000e+00> : vector<2x64xf32>
    %1 = vector.multi_reduction <add>, %0, %cst [2] : vector<2x64x256xf32> to vector<2x64xf32>
    %cst_2 = arith.constant 3.906250e-03 : f32
    %2 = vector.broadcast %cst_2 : f32 to vector<2x64xf32>
    %3 = arith.mulf %1, %2 : vector<2x64xf32>
    %c0_3 = arith.constant 0 : index
    %c0_4 = arith.constant 0 : index
    %4 = vector.load %arg2[%c0_3, %c0_4] : memref<64x4xf32, #tpu.memory_space<vmem>>, vector<64x4xf32>
    %cst_5 = arith.constant dense<0.000000e+00> : vector<2x4xf32>
    %5 = tpu.matmul %3, %4, %cst_5 {dimension_numbers = #tpu.dot_dimension_numbers<[1], [0], [0], [1], [0, 0, 1, 1], [], []>} : vector<2x64xf32>, vector<64x4xf32>, vector<2x4xf32> -> vector<2x4xf32>
    %c0_6 = arith.constant 0 : index
    %c0_7 = arith.constant 0 : index
    %6 = vector.load %arg3[%c0_6, %c0_7] : memref<1x4xf32, #tpu.memory_space<vmem>>, vector<1x4xf32>
    %7 = vector.broadcast %6 : vector<1x4xf32> to vector<2x4xf32>
    %8 = arith.addf %5, %7 : vector<2x4xf32>
    %cst_8 = arith.constant 0.000000e+00 : f32
    %9 = vector.broadcast %cst_8 : f32 to vector<2x4xf32>
    %10 = arith.maximumf %8, %9 : vector<2x4xf32>
    %c0_9 = arith.constant 0 : index
    %c0_10 = arith.constant 0 : index
    %11 = vector.load %arg4[%c0_9, %c0_10] : memref<4x64xf32, #tpu.memory_space<vmem>>, vector<4x64xf32>
    %cst_11 = arith.constant dense<0.000000e+00> : vector<2x64xf32>
    %12 = tpu.matmul %10, %11, %cst_11 {dimension_numbers = #tpu.dot_dimension_numbers<[1], [0], [0], [1], [0, 0, 1, 1], [], []>} : vector<2x4xf32>, vector<4x64xf32>, vector<2x64xf32> -> vector<2x64xf32>
    %c0_12 = arith.constant 0 : index
    %c0_13 = arith.constant 0 : index
    %13 = vector.load %arg5[%c0_12, %c0_13] : memref<1x64xf32, #tpu.memory_space<vmem>>, vector<1x64xf32>
    %14 = vector.broadcast %13 : vector<1x64xf32> to vector<2x64xf32>
    %15 = arith.addf %12, %14 : vector<2x64xf32>
    %16 = arith.negf %15 : vector<2x64xf32>
    %17 = math.exp %16 : vector<2x64xf32>
    %cst_14 = arith.constant 1.000000e+00 : f32
    %18 = vector.broadcast %cst_14 : f32 to vector<2x64xf32>
    %19 = arith.addf %18, %17 : vector<2x64xf32>
    %20 = arith.divf %18, %19 : vector<2x64xf32>
    %c0_15 = arith.constant 0 : index
    %c0_16 = arith.constant 0 : index
    %c0_17 = arith.constant 0 : index
    %21 = vector.load %arg1[%c0_15, %c0_16, %c0_17] : memref<2x64x256xf32, #tpu.memory_space<vmem>>, vector<2x64x256xf32>
    %22 = vector.shape_cast %20 : vector<2x64xf32> to vector<2x64x1xf32>
    %23 = vector.broadcast %22 : vector<2x64x1xf32> to vector<2x64x256xf32>
    %24 = arith.mulf %21, %23 : vector<2x64x256xf32>
    %c0_18 = arith.constant 0 : index
    %c0_19 = arith.constant 0 : index
    %c0_20 = arith.constant 0 : index
    %25 = vector.load %arg6[%c0_18, %c0_19, %c0_20] : memref<2x64x256xf32, #tpu.memory_space<vmem>>, vector<2x64x256xf32>
    tpu.vector_store %arg6[%c0_18, %c0_19, %c0_20], %24 {strides = array<i32>} : memref<2x64x256xf32, #tpu.memory_space<vmem>>, vector<2x64x256xf32>,
    return
  }
  func.func @transform_0(%arg0: i32) -> (i32, i32, i32) {
    %c0_i32 = arith.constant 0 : i32
    %c0_i32_0 = arith.constant 0 : i32
    %c0_i32_1 = arith.constant 0 : i32
    return %arg0, %c0_i32, %c0_i32_0 : i32, i32, i32
  }
  func.func @transform_1(%arg0: i32) -> (i32, i32) {
    %c0_i32 = arith.constant 0 : i32
    %c0_i32_0 = arith.constant 0 : i32
    %c0_i32_1 = arith.constant 0 : i32
    return %c0_i32, %c0_i32_0 : i32, i32
  }
  func.func @transform_2(%arg0: i32) -> (i32, i32) {
    %c0_i32 = arith.constant 0 : i32
    %c0_i32_0 = arith.constant 0 : i32
    %c0_i32_1 = arith.constant 0 : i32
    return %c0_i32, %c0_i32_0 : i32, i32
  }
  func.func @transform_3(%arg0: i32) -> (i32, i32) {
    %c0_i32 = arith.constant 0 : i32
    %c0_i32_0 = arith.constant 0 : i32
    %c0_i32_1 = arith.constant 0 : i32
    return %c0_i32, %c0_i32_0 : i32, i32
  }
  func.func @transform_4(%arg0: i32) -> (i32, i32) {
    %c0_i32 = arith.constant 0 : i32
    %c0_i32_0 = arith.constant 0 : i32
    %c0_i32_1 = arith.constant 0 : i32
    return %c0_i32, %c0_i32_0 : i32, i32
  }
  func.func @transform_5(%arg0: i32) -> (i32, i32, i32) {
    %c0_i32 = arith.constant 0 : i32
    %c0_i32_0 = arith.constant 0 : i32
    %c0_i32_1 = arith.constant 0 : i32
    return %arg0, %c0_i32, %c0_i32_0 : i32, i32, i32
  }
}

</mosaic_0001>

<llo_original>
// kernel: tpu_custom_call.1
$region0: #{tpu_custom_call.1}
  #allocation0 [shape = 'u32[]', space=smem, size = 0x4, offset = 0x4, fixed_abs, tag = 'smem constant byte address 0x4 - core index']
  #allocation1 [shape = 'u32[72,128]{1,0:T(1,128)}', space=vmem, size = 0x9000, scoped, tag = 'internal scratch']
  %s0 = inlined_call_operand.hbm [shape: f32[5,64,256], index: 0, kind: input, shape index: {}]
  %s1 = inlined_call_operand.vmem [shape: f32[64,4], index: 1, kind: input, shape index: {}]
  %s2 = inlined_call_operand.vmem [shape: f32[1,4], index: 2, kind: input, shape index: {}]
  %s3 = inlined_call_operand.vmem [shape: f32[4,64], index: 3, kind: input, shape index: {}]
  %s4 = inlined_call_operand.vmem [shape: f32[1,64], index: 4, kind: input, shape index: {}]
  %s5 = inlined_call_operand.hbm [shape: f32[5,64,256], index: 5, kind: output, shape index: {}]
  %s6 = sld [smem:[#allocation0]]
  $region57: #{tpu_custom_call.1} parent=0
    _
  %s8 = ssub.s32 1, %s6
  %s9 = scalar_select 0, %s8, %s6
  $region1: #{tpu_custom_call.1} parent=0
    #allocation2 [shape = 'u8[262144]{0}', space=vmem, size = 0x40000, scoped, tag = 'input window, operand 0']
    #allocation3 [shape = 's32[2]{0}', space=sflag, size = 0x8, scoped, tag = 'scoped memory for tpu_custom_call.1']
    #allocation4 [shape = 's32[2]{0}', space=sflag, size = 0x8, scoped, tag = 'scoped memory for tpu_custom_call.1']
    #allocation5 [shape = 'u8[262144]{0}', space=vmem, size = 0x40000, scoped, tag = 'output window, operand 0']
    %10 = vsyncpa [#allocation3], 0
    %s11 = scalar_lea.sflag [#allocation3], 1
    %12 = vsyncpa %s11, 0
    %13 = vsyncpa [#allocation4], 0
    %s14 = scalar_lea.sflag [#allocation4], 1
    %15 = vsyncpa %s14, 0
    loop: start=0, step=1, limit=5
    $region2: #{tpu_custom_call.1} parent=1 // loop_pre_header
      _
    $region3: #{tpu_custom_call.1} parent=1 // loop_header
      %s17 = sphi 0, %s21
      %p18 = scmp.ge.s32.totalorder %s17, 5
      %s27 = sphi 0, %s29
      %s30 = sphi 0, %s27
      %s31 = sphi 0, %s30
      %s47 = sphi 0, %s31
      %s51 = sphi 0, %s51
      %s53 = sphi 0, %s51
      %s54 = sphi 0, %s53
      %s68 = sphi 0, %s54
      %s72 = sphi 0, %s72
      %s74 = sphi 0, %s72
      %s75 = sphi 0, %s74
      %s89 = sphi 0, %s75
      %s93 = sphi 0, %s93
      %s95 = sphi 0, %s93
      %s96 = sphi 0, %s95
      %s110 = sphi 0, %s96
      %s114 = sphi 0, %s114
      %s116 = sphi 0, %s114
      %s117 = sphi 0, %s116
      %s131 = sphi 0, %s117
      %s137 = sphi 0, %s139
      %s140 = sphi 0, %s137
      %s141 = sphi 0, %s140
      %s157 = sphi 0, %s141
    $region4: #{tpu_custom_call.1} parent=1 // loop_header_branch
      %20 = sbr.rel (%p18) target = $region8
    $region5: #{tpu_custom_call.1} parent=1 // loop_body
      %s22 = ssub.s32 %s17, 1
      %s23 = ssub.s32 %s17, 2
      %s24 = sadd.s32 %s17, 1
      %s25 = ssub.s32 %s17, %s24
      %p26 = scmp.eq.s32.totalorder %s25, 0
      %s28 = sadd.s32 %s27, 1
      %s29 = scalar_select %p26, %s27, %s28
      %p32 = pneg %p26
      %p33 = scmp.eq.s32.totalorder %s17, 2
      %p34 = por %p32, %p33
      %p35 = scmp.ne.s32.totalorder %s27, %s30
      %p36 = scmp.eq.s32.totalorder %s17, 0
      %p37 = por %p35, %p36
      %p38 = scmp.ne.s32.totalorder %s27, %s30
      %p39 = scmp.eq.s32.totalorder %s22, 2
      %p40 = por %p38, %p39
      %p41 = scmp.ne.s32.totalorder %s30, %s31
      %p42 = scmp.eq.s32.totalorder %s22, 0
      %p43 = por %p41, %p42
      %p44 = scmp.ne.s32.totalorder %s30, %s31
      %p45 = scmp.eq.s32.totalorder %s23, 2
      %p46 = por %p44, %p45
      %p48 = scmp.ne.s32.totalorder %s31, %s47
      %p49 = scmp.eq.s32.totalorder %s23, 0
      %p50 = por %p48, %p49
      %s52 = sadd.s32 %s51, 1
      %p55 = scmp.eq.s32.totalorder %s17, 2
      %p56 = scmp.ne.s32.totalorder %s51, %s53
      %p57 = scmp.eq.s32.totalorder %s17, 0
      %p58 = por %p56, %p57
      %p59 = scmp.ne.s32.totalorder %s51, %s53
      %p60 = scmp.eq.s32.totalorder %s22, 2
      %p61 = por %p59, %p60
      %p62 = scmp.ne.s32.totalorder %s53, %s54
      %p63 = scmp.eq.s32.totalorder %s22, 0
      %p64 = por %p62, %p63
      %p65 = scmp.ne.s32.totalorder %s53, %s54
      %p66 = scmp.eq.s32.totalorder %s23, 2
      %p67 = por %p65, %p66
      %p69 = scmp.ne.s32.totalorder %s54, %s68
      %p70 = scmp.eq.s32.totalorder %s23, 0
      %p71 = por %p69, %p70
      %s73 = sadd.s32 %s72, 1
      %p76 = scmp.eq.s32.totalorder %s17, 2
      %p77 = scmp.ne.s32.totalorder %s72, %s74
      %p78 = scmp.eq.s32.totalorder %s17, 0
      %p79 = por %p77, %p78
      %p80 = scmp.ne.s32.totalorder %s72, %s74
      %p81 = scmp.eq.s32.totalorder %s22, 2
      %p82 = por %p80, %p81
      %p83 = scmp.ne.s32.totalorder %s74, %s75
      %p84 = scmp.eq.s32.totalorder %s22, 0
      %p85 = por %p83, %p84
      %p86 = scmp.ne.s32.totalorder %s74, %s75
      %p87 = scmp.eq.s32.totalorder %s23, 2
      %p88 = por %p86, %p87
      %p90 = scmp.ne.s32.totalorder %s75, %s89
      %p91 = scmp.eq.s32.totalorder %s23, 0
      %p92 = por %p90, %p91
      %s94 = sadd.s32 %s93, 1
      %p97 = scmp.eq.s32.totalorder %s17, 2
      %p98 = scmp.ne.s32.totalorder %s93, %s95
      %p99 = scmp.eq.s32.totalorder %s17, 0
      %p100 = por %p98, %p99
      %p101 = scmp.ne.s32.totalorder %s93, %s95
      %p102 = scmp.eq.s32.totalorder %s22, 2
      %p103 = por %p101, %p102
      %p104 = scmp.ne.s32.totalorder %s95, %s96
      %p105 = scmp.eq.s32.totalorder %s22, 0
      %p106 = por %p104, %p105
      %p107 = scmp.ne.s32.totalorder %s95, %s96
      %p108 = scmp.eq.s32.totalorder %s23, 2
      %p109 = por %p107, %p108
      %p111 = scmp.ne.s32.totalorder %s96, %s110
      %p112 = scmp.eq.s32.totalorder %s23, 0
      %p113 = por %p111, %p112
      %s115 = sadd.s32 %s114, 1
      %p118 = scmp.eq.s32.totalorder %s17, 2
      %p119 = scmp.ne.s32.totalorder %s114, %s116
      %p120 = scmp.eq.s32.totalorder %s17, 0
      %p121 = por %p119, %p120
      %p122 = scmp.ne.s32.totalorder %s114, %s116
      %p123 = scmp.eq.s32.totalorder %s22, 2
      %p124 = por %p122, %p123
      %p125 = scmp.ne.s32.totalorder %s116, %s117
      %p126 = scmp.eq.s32.totalorder %s22, 0
      %p127 = por %p125, %p126
      %p128 = scmp.ne.s32.totalorder %s116, %s117
      %p129 = scmp.eq.s32.totalorder %s23, 2
      %p130 = por %p128, %p129
      %p132 = scmp.ne.s32.totalorder %s117, %s131
      %p133 = scmp.eq.s32.totalorder %s23, 0
      %p134 = por %p132, %p133
      %s135 = ssub.s32 %s17, %s24
      %p136 = scmp.eq.s32.totalorder %s135, 0
      %s138 = sadd.s32 %s137, 1
      %s139 = scalar_select %p136, %s137, %s138
      %p142 = pneg %p136
      %p143 = scmp.eq.s32.totalorder %s17, 2
      %p144 = por %p142, %p143
      %p145 = scmp.ne.s32.totalorder %s137, %s140
      %p146 = scmp.eq.s32.totalorder %s17, 0
      %p147 = por %p145, %p146
      %p148 = scmp.ne.s32.totalorder %s137, %s140
      %p149 = scmp.eq.s32.totalorder %s22, 2
      %p150 = por %p148, %p149
      %p151 = scmp.ne.s32.totalorder %s140, %s141
      %p152 = scmp.eq.s32.totalorder %s22, 0
      %p153 = por %p151, %p152
      %p154 = scmp.ne.s32.totalorder %s140, %s141
      %p155 = scmp.eq.s32.totalorder %s23, 2
      %p156 = por %p154, %p155
      %p158 = scmp.ne.s32.totalorder %s141, %s157
      %p159 = scmp.eq.s32.totalorder %s23, 0
      %p160 = por %p158, %p159
      %p161 = scmp.le.s32.totalorder 1, %s17
      %p162 = scmp.lt.s32.totalorder %s17, 4
      %p163 = pnand %p161, %p162
      %p164 = pneg %p163
      // Predicated region
      $region9: #{tpu_custom_call.1} parent=5 // pred_check
        _
      $region10: #{tpu_custom_call.1} parent=5 // pred_check_branch
        %166 = sbr.rel (%p163) target = $region12
      $region11: #{tpu_custom_call.1} parent=5 // pred_region
        %s167 = ssub.s32 %s17, 1
        // Predicated region
        $region13: #{tpu_custom_call.1} parent=11 // pred_check
          %p168 = pneg %p64
        $region14: #{tpu_custom_call.1} parent=11 // pred_check_branch
          %170 = sbr.rel (%p168) target = $region16
        $region15: #{tpu_custom_call.1} parent=11 // pred_region
          _
        $region16: #{tpu_custom_call.1} parent=11 // pred_fallthru
          _
        // Predicated region
        $region17: #{tpu_custom_call.1} parent=11 // pred_check
          %p171 = pneg %p85
        $region18: #{tpu_custom_call.1} parent=11 // pred_check_branch
          %173 = sbr.rel (%p171) target = $region20
        $region19: #{tpu_custom_call.1} parent=11 // pred_region
          _
        $region20: #{tpu_custom_call.1} parent=11 // pred_fallthru
          _
        // Predicated region
        $region21: #{tpu_custom_call.1} parent=11 // pred_check
          %p174 = pneg %p106
        $region22: #{tpu_custom_call.1} parent=11 // pred_check_branch
          %176 = sbr.rel (%p174) target = $region24
        $region23: #{tpu_custom_call.1} parent=11 // pred_region
          _
        $region24: #{tpu_custom_call.1} parent=11 // pred_fallthru
          _
        // Predicated region
        $region25: #{tpu_custom_call.1} parent=11 // pred_check
          %p177 = pneg %p127
        $region26: #{tpu_custom_call.1} parent=11 // pred_check_branch
          %179 = sbr.rel (%p177) target = $region28
        $region27: #{tpu_custom_call.1} parent=11 // pred_region
          _
        $region28: #{tpu_custom_call.1} parent=11 // pred_fallthru
          _
      $region12: #{tpu_custom_call.1} parent=5 // pred_fallthru
        _
      %p180 = scmp.lt.s32.totalorder %s17, 3
      // Predicated region
      $region29: #{tpu_custom_call.1} parent=5 // pred_check
        %p181 = pneg %p180
      $region30: #{tpu_custom_call.1} parent=5 // pred_check_branch
        %183 = sbr.rel (%p181) target = $region32
      $region31: #{tpu_custom_call.1} parent=5 // pred_region
        // Predicated region
        $region33: #{tpu_custom_call.1} parent=31 // pred_check
          %p184 = pneg %p37
        $region34: #{tpu_custom_call.1} parent=31 // pred_check_branch
          %186 = sbr.rel (%p184) target = $region36
        $region35: #{tpu_custom_call.1} parent=31 // pred_region
          %s187 = sand.u32 %s27, 1
          %s188 = scalar_lea.sflag [#allocation3], %s187
          %s189 = sand.u32 %s27, 1
          %s190 = smul.addr %s189, 256
          %s191 = scalar_lea.vmem [#allocation2], %s190
          %s192 = smul.u32 2, %s17
          %s193 = ssub.s32 5, %s192
          %p194 = scmp.lt.s32.totalorder %s193, 2
          %s195 = scalar_select %p194, %s193, 2
          %s196 = smul.u32 8, %s195
          %s197 = smul.u32 %s196, 8
          %s198 = smul.u32 %s197, 2
          %s199 = ssub.s32 256, %s198
          %s200 = sshll.u32 %s199, 4
          %201 = vsyncadd %s188, %s200
          %p202 = scmp.ne.s32.totalorder 0, %s198
          %s203 = smul.addr %s192, 16
          %s204 = smul.addr %s203, 8
          %s205 = scalar_lea.hbm %s0, %s204
          %s206 = smul.u32 %s195, 8
          %s207 = smul.u32 16, %s206
          %s208 = sshll.u32 %s205, 4
          %s209 = int_to_ptr.hbm [resolvable:$true] %s208
          %s210 = sshll.u32 %s191, 4
          %s211 = int_to_ptr.vmem [resolvable:$true] %s210
          %s212 = sshll.u32 %s207, 4
          %216 = dma.hbm_to_vmem [thread:$0]  (%p202), %s209, %s212, %s211, %s188, 256, 256, 16
        $region36: #{tpu_custom_call.1} parent=31 // pred_fallthru
          _
      $region32: #{tpu_custom_call.1} parent=5 // pred_fallthru
        _
      %p217 = scmp.le.s32.totalorder 1, %s17
      %p218 = scmp.lt.s32.totalorder %s17, 4
      %p219 = pnand %p217, %p218
      %p220 = pneg %p219
      // Predicated region
      $region37: #{tpu_custom_call.1} parent=5 // pred_check
        _
      $region38: #{tpu_custom_call.1} parent=5 // pred_check_branch
        %222 = sbr.rel (%p219) target = $region40
      $region39: #{tpu_custom_call.1} parent=5 // pred_region
        %s223 = ssub.s32 %s17, 1
        %s224 = sand.u32 %s30, 1
        %s225 = scalar_lea.sflag [#allocation3], %s224
        %s226 = sand.u32 %s30, 1
        %s227 = smul.addr %s226, 256
        %s228 = scalar_lea.vmem [#allocation2], %s227
        // Predicated region
        $region41: #{tpu_custom_call.1} parent=39 // pred_check
          %p229 = pneg %p43
        $region42: #{tpu_custom_call.1} parent=39 // pred_check_branch
          %231 = sbr.rel (%p229) target = $region44
        $region43: #{tpu_custom_call.1} parent=39 // pred_region
          %233 = dma.done %s225, 4096
        $region44: #{tpu_custom_call.1} parent=39 // pred_fallthru
          _
        %s234 = sand.u32 %s30, 1
        %s235 = scalar_lea.sflag [#allocation3], %s234
        %s236 = sand.u32 %s30, 1
        %s237 = smul.addr %s236, 256
        %s238 = scalar_lea.vmem [#allocation2], %s237
        %p239 = pneg %p43
        %p240 = pneg %p40
        %p241 = pneg %p64
        %p242 = pneg %p61
        %p243 = pneg %p85
        %p244 = pneg %p82
        %p245 = pneg %p106
        %p246 = pneg %p103
        %p247 = pneg %p127
        %p248 = pneg %p124
        %p249 = pneg %p153
        %p250 = pneg %p150
        %s251 = sand.u32 %s140, 1
        %s252 = scalar_lea.sflag [#allocation4], %s251
        %s253 = sand.u32 %s140, 1
        %s254 = smul.addr %s253, 256
        %s255 = scalar_lea.vmem [#allocation5], %s254
        %s256 = smul.u32 2, %s22
        %s257 = ssub.s32 5, %s256
        %p258 = scmp.lt.s32.totalorder %s257, 2
        %s259 = scalar_select %p258, %s257, 2
        %s260 = smul.u32 8, %s259
        %s261 = smul.u32 %s260, 8
        %s262 = smul.u32 %s261, 2
        %s263 = smul.u32 2, %s22
        %s264 = ssub.s32 5, %s263
        %p265 = scmp.lt.s32.totalorder %s264, 2
        %s266 = scalar_select %p265, %s264, 2
        %s267 = smul.u32 8, %s266
        %s268 = smul.u32 %s267, 8
        %s269 = smul.u32 %s268, 2
        %v270 = vld [vmem:[%s228] sm:$0xff]
        %v271 = vld [vmem:[%s228 + $0x8] sm:$0xff]
        %v272 = vld [vmem:[%s228 + $0x10] sm:$0xff]
        %v273 = vld [vmem:[%s228 + $0x18] sm:$0xff]
        %v274 = vld [vmem:[%s228 + $0x20] sm:$0xff]
        %v275 = vld [vmem:[%s228 + $0x28] sm:$0xff]
        %v276 = vld [vmem:[%s228 + $0x30] sm:$0xff]
        %v277 = vld [vmem:[%s228 + $0x38] sm:$0xff]
        %v278 = vld [vmem:[%s228 + $0x40] sm:$0xff]
        %v279 = vld [vmem:[%s228 + $0x48] sm:$0xff]
        %v280 = vld [vmem:[%s228 + $0x50] sm:$0xff]
        %v281 = vld [vmem:[%s228 + $0x58] sm:$0xff]
        %v282 = vld [vmem:[%s228 + $0x60] sm:$0xff]
        %v283 = vld [vmem:[%s228 + $0x68] sm:$0xff]
        %v284 = vld [vmem:[%s228 + $0x70] sm:$0xff]
        %v285 = vld [vmem:[%s228 + $0x78] sm:$0xff]
        %v286 = vld [vmem:[%s228 + $0x80] sm:$0xff]
        %v287 = vld [vmem:[%s228 + $0x88] sm:$0xff]
        %v288 = vld [vmem:[%s228 + $0x90] sm:$0xff]
        %v289 = vld [vmem:[%s228 + $0x98] sm:$0xff]
        %v290 = vld [vmem:[%s228 + $0xa0] sm:$0xff]
        %v291 = vld [vmem:[%s228 + $0xa8] sm:$0xff]
        %v292 = vld [vmem:[%s228 + $0xb0] sm:$0xff]
        %v293 = vld [vmem:[%s228 + $0xb8] sm:$0xff]
        %v294 = vld [vmem:[%s228 + $0xc0] sm:$0xff]
        %v295 = vld [vmem:[%s228 + $0xc8] sm:$0xff]
        %v296 = vld [vmem:[%s228 + $0xd0] sm:$0xff]
        %v297 = vld [vmem:[%s228 + $0xd8] sm:$0xff]
        %v298 = vld [vmem:[%s228 + $0xe0] sm:$0xff]
        %v299 = vld [vmem:[%s228 + $0xe8] sm:$0xff]
        %v300 = vld [vmem:[%s228 + $0xf0] sm:$0xff]
        %v301 = vld [vmem:[%s228 + $0xf8] sm:$0xff]
        %v302 = vadd.f32 %v270, %v271
        %303 = vadd.xlane.f32.xlu0 %v302
        %v304 = vpop.xlane.xlu0 %303
        %v305 = vadd.f32 %v272, %v273
        %306 = vadd.xlane.f32.xlu0 %v305
        %v307 = vpop.xlane.xlu0 %306
        %v308 = vadd.f32 %v274, %v275
        %309 = vadd.xlane.f32.xlu0 %v308
        %v310 = vpop.xlane.xlu0 %309
        %v311 = vadd.f32 %v276, %v277
        %312 = vadd.xlane.f32.xlu0 %v311
        %v313 = vpop.xlane.xlu0 %312
        %v314 = vadd.f32 %v278, %v279
        %315 = vadd.xlane.f32.xlu0 %v314
        %v316 = vpop.xlane.xlu0 %315
        %v317 = vadd.f32 %v280, %v281
        %318 = vadd.xlane.f32.xlu0 %v317
        %v319 = vpop.xlane.xlu0 %318
        %v320 = vadd.f32 %v282, %v283
        %321 = vadd.xlane.f32.xlu0 %v320
        %v322 = vpop.xlane.xlu0 %321
        %v323 = vadd.f32 %v284, %v285
        %324 = vadd.xlane.f32.xlu0 %v323
        %v325 = vpop.xlane.xlu0 %324
        %v326 = vadd.f32 %v286, %v287
        %327 = vadd.xlane.f32.xlu0 %v326
        %v328 = vpop.xlane.xlu0 %327
        %v329 = vadd.f32 %v288, %v289
        %330 = vadd.xlane.f32.xlu0 %v329
        %v331 = vpop.xlane.xlu0 %330
        %v332 = vadd.f32 %v290, %v291
        %333 = vadd.xlane.f32.xlu0 %v332
        %v334 = vpop.xlane.xlu0 %333
        %v335 = vadd.f32 %v292, %v293
        %336 = vadd.xlane.f32.xlu0 %v335
        %v337 = vpop.xlane.xlu0 %336
        %v338 = vadd.f32 %v294, %v295
        %339 = vadd.xlane.f32.xlu0 %v338
        %v340 = vpop.xlane.xlu0 %339
        %v341 = vadd.f32 %v296, %v297
        %342 = vadd.xlane.f32.xlu0 %v341
        %v343 = vpop.xlane.xlu0 %342
        %v344 = vadd.f32 %v298, %v299
        %345 = vadd.xlane.f32.xlu0 %v344
        %v346 = vpop.xlane.xlu0 %345
        %v347 = vadd.f32 %v300, %v301
        %348 = vadd.xlane.f32.xlu0 %v347
        %v349 = vpop.xlane.xlu0 %348
        %v350 = vmul.f32 %v304, 0.00390625
        %v351 = vmul.f32 %v307, 0.00390625
        %v352 = vmul.f32 %v310, 0.00390625
        %v353 = vmul.f32 %v313, 0.00390625
        %v354 = vmul.f32 %v316, 0.00390625
        %v355 = vmul.f32 %v319, 0.00390625
        %v356 = vmul.f32 %v322, 0.00390625
        %v357 = vmul.f32 %v325, 0.00390625
        %v358 = vmul.f32 %v328, 0.00390625
        %v359 = vmul.f32 %v331, 0.00390625
        %v360 = vmul.f32 %v334, 0.00390625
        %v361 = vmul.f32 %v337, 0.00390625
        %v362 = vmul.f32 %v340, 0.00390625
        %v363 = vmul.f32 %v343, 0.00390625
        %v364 = vmul.f32 %v346, 0.00390625
        %v365 = vmul.f32 %v349, 0.00390625
        %v366 = vld [vmem:[%s1] sm:$0xff]
        %v367 = vld [vmem:[%s1 + $0x8] sm:$0xff]
        %v368 = vld [vmem:[%s1 + $0x10] sm:$0xff]
        %v369 = vld [vmem:[%s1 + $0x18] sm:$0xff]
        %v370 = vld [vmem:[%s1 + $0x20] sm:$0xff]
        %v371 = vld [vmem:[%s1 + $0x28] sm:$0xff]
        %v372 = vld [vmem:[%s1 + $0x30] sm:$0xff]
        %v373 = vld [vmem:[%s1 + $0x38] sm:$0xff]
        %v374 = vld [vmem:[%s2] sm:$0x1]
        %v376 = vperm.slane %v374, 0
        %v394 = vlaneseq
        %v395 = vand.u32 %v394, 127
        %v396 = vperm.slane %v350, %v395
        %v397 = vadd.s32 %v395, 4294967288
        %v398 = vperm.slane %v351, %v397
        %vm399 = vcmask 130112
        %v400 = vsel %vm399, %v398, %v396
        %v401 = vadd.s32 %v395, 4294967280
        %v402 = vperm.slane %v352, %v401
        %vm403 = vcmask 195712
        %v404 = vsel %vm403, %v402, %v400
        %v405 = vadd.s32 %v395, 4294967272
        %v406 = vperm.slane %v353, %v405
        %vm407 = vcmask 261312
        %v408 = vsel %vm407, %v406, %v404
        %v409 = vadd.s32 %v395, 4294967264
        %v410 = vperm.slane %v354, %v409
        %vm411 = vcmask 326912
        %v412 = vsel %vm411, %v410, %v408
        %v413 = vadd.s32 %v395, 4294967256
        %v414 = vperm.slane %v355, %v413
        %vm415 = vcmask 392512
        %v416 = vsel %vm415, %v414, %v412
        %v417 = vadd.s32 %v395, 4294967248
        %v418 = vperm.slane %v356, %v417
        %vm419 = vcmask 458112
        %v420 = vsel %vm419, %v418, %v416
        %v421 = vadd.s32 %v395, 4294967240
        %v422 = vperm.slane %v357, %v421
        %vm423 = vcmask 523712
        %v424 = vsel %vm423, %v422, %v420
        %v425 = vperm.slane %v358, %v395
        %v426 = vperm.slane %v359, %v397
        %v427 = vsel %vm399, %v426, %v425
        %v428 = vperm.slane %v360, %v401
        %v429 = vsel %vm403, %v428, %v427
        %v430 = vperm.slane %v361, %v405
        %v431 = vsel %vm407, %v430, %v429
        %v432 = vperm.slane %v362, %v409
        %v433 = vsel %vm411, %v432, %v431
        %v434 = vperm.slane %v363, %v413
        %v435 = vsel %vm415, %v434, %v433
        %v436 = vperm.slane %v364, %v417
        %v437 = vsel %vm419, %v436, %v435
        %v438 = vperm.slane %v365, %v421
        %v439 = vsel %vm423, %v438, %v437
        %vm440 = vcmask 1041409
        %v441 = vsel %vm440, %v439, %v424
        %vm442 = vcmask 523264
        %v443 = vsel %vm442, %v441, 0
        %445 = vmatpush.msra.mxu0 0.0
        %446 = vmatpush.msra.mxu0 0.0
        %447 = vmatpush.msra.mxu0 0.0
        %448 = vmatpush.msra.mxu0 0.0
        %449 = vmatpush.msra.mxu0 0.0
        %450 = vmatpush.msra.mxu0 0.0
        %451 = vmatpush.msra.mxu0 0.0
        %452 = vmatpush.msra.mxu0 0.0
        %453 = vmatpush.msra.mxu0 %v373
        %454 = vmatpush.msra.mxu0 %v372
        %455 = vmatpush.msra.mxu0 %v371
        %456 = vmatpush.msra.mxu0 %v370
        %457 = vmatpush.msra.mxu0 %v369
        %458 = vmatpush.msra.mxu0 %v368
        %459 = vmatpush.msra.mxu0 %v367
        %460 = vmatpush.msra.mxu0 %v366
        %461 = vmatmul.f32.gmra.mxu0 %v443
        %v462 = vpop.f32.mrf.mxu0
        %v463 = vadd.f32 %v376, %v462
        %464 = vdwg.mxu0
        %v465 = vmax.f32 %v463, 0.0
        %v466 = vld [vmem:[%s3] sm:$0xf]
        %v467 = vld [vmem:[%s4] sm:$0x1]
        %v469 = vperm.slane %v467, 0
        %vm471 = vcmask 31744
        %v473 = vsel %vm471, %v465, 0
        %vm475 = vcmask 1043456
        %v477 = vsel %vm475, %v466, 0
        %479 = vmatpush.msra.mxu0 0.0
        %480 = vmatpush.msra.mxu0 0.0
        %481 = vmatpush.msra.mxu0 0.0
        %482 = vmatpush.msra.mxu0 0.0
        %483 = vmatpush.msra.mxu0 0.0
        %484 = vmatpush.msra.mxu0 0.0
        %485 = vmatpush.msra.mxu0 0.0
        %486 = vmatpush.msra.mxu0 0.0
        %487 = vmatpush.msra.mxu0 0.0
        %488 = vmatpush.msra.mxu0 0.0
        %489 = vmatpush.msra.mxu0 0.0
        %490 = vmatpush.msra.mxu0 0.0
        %491 = vmatpush.msra.mxu0 0.0
        %492 = vmatpush.msra.mxu0 0.0
        %493 = vmatpush.msra.mxu0 0.0
        %494 = vmatpush.msra.mxu0 %v477
        %495 = vmatmul.f32.gmra.mxu0 %v473
        %v496 = vpop.f32.mrf.mxu0
        %v497 = vadd.f32 %v469, %v496
        %498 = vdwg.mxu0
        %v499 = vxor.u32 %v497, 2147483648
        %v500 = vmul.f32 %v499, 1.442695
        %v501 = vpow.pop %v500
        %v502 = vadd.f32 %v501, 1.0
        %v503 = vrcp.pop %v502
        %v504 = vmul.f32 %v502, %v503
        %v505 = vsub.f32 1.0, %v504
        %v506 = vmul.f32 %v503, %v505
        %v507 = vadd.f32 %v503, %v506
        %vm508 = vweird.f32 %v502
        %vm509 = vweird.f32 %v503
        %vm510 = vmor %vm508, %vm509
        %v511 = vsel %vm510, %v503, %v507
        %v512 = vand.u32 2147483647, %v502
        %vm513 = vcmp.eq.f32.partialorder %v512, 8.507059e+37
        %v514 = vand.u32 %v502, 2147483648
        %v515 = vor.u32 1.1754944e-38, %v514
        %v516 = vsel %vm513, %v515, %v511
        %v517 = vmul.f32 1.0, %v516
        %v518 = vperm.slane %v517, 0
        %v519 = vlaneseq
        %v520 = vshrl.u32 %v519, 7
        %522 = vset.pattern.permute.xlu0 %v520
        %523 = vperm.xlu0 %522, %v518
        %v524 = vpop.permute.xlu0 %523
        %v525 = vlaneseq
        %v526 = vshrl.u32 %v525, 7
        %v527 = vadd.s32 %v526, 8
        %528 = vset.pattern.permute.xlu0 %v527
        %529 = vperm.xlu0 %528, %v518
        %v530 = vpop.permute.xlu0 %529
        %v531 = vlaneseq
        %v532 = vshrl.u32 %v531, 7
        %v533 = vadd.s32 %v532, 16
        %534 = vset.pattern.permute.xlu0 %v533
        %535 = vperm.xlu0 %534, %v518
        %v536 = vpop.permute.xlu0 %535
        %v537 = vlaneseq
        %v538 = vshrl.u32 %v537, 7
        %v539 = vadd.s32 %v538, 24
        %540 = vset.pattern.permute.xlu0 %v539
        %541 = vperm.xlu0 %540, %v518
        %v542 = vpop.permute.xlu0 %541
        %v543 = vlaneseq
        %v544 = vshrl.u32 %v543, 7
        %v545 = vadd.s32 %v544, 32
        %546 = vset.pattern.permute.xlu0 %v545
        %547 = vperm.xlu0 %546, %v518
        %v548 = vpop.permute.xlu0 %547
        %v549 = vlaneseq
        %v550 = vshrl.u32 %v549, 7
        %v551 = vadd.s32 %v550, 40
        %552 = vset.pattern.permute.xlu0 %v551
        %553 = vperm.xlu0 %552, %v518
        %v554 = vpop.permute.xlu0 %553
        %v555 = vlaneseq
        %v556 = vshrl.u32 %v555, 7
        %v557 = vadd.s32 %v556, 48
        %558 = vset.pattern.permute.xlu0 %v557
        %559 = vperm.xlu0 %558, %v518
        %v560 = vpop.permute.xlu0 %559
        %v561 = vlaneseq
        %v562 = vshrl.u32 %v561, 7
        %v563 = vadd.s32 %v562, 56
        %564 = vset.pattern.permute.xlu0 %v563
        %565 = vperm.xlu0 %564, %v518
        %v566 = vpop.permute.xlu0 %565
        %v567 = vperm.slane %v517, 1
        %v568 = vlaneseq
        %v569 = vshrl.u32 %v568, 7
        %571 = vset.pattern.permute.xlu0 %v569
        %572 = vperm.xlu0 %571, %v567
        %v573 = vpop.permute.xlu0 %572
        %v574 = vlaneseq
        %v575 = vshrl.u32 %v574, 7
        %v576 = vadd.s32 %v575, 8
        %577 = vset.pattern.permute.xlu0 %v576
        %578 = vperm.xlu0 %577, %v567
        %v579 = vpop.permute.xlu0 %578
        %v580 = vlaneseq
        %v581 = vshrl.u32 %v580, 7
        %v582 = vadd.s32 %v581, 16
        %583 = vset.pattern.permute.xlu0 %v582
        %584 = vperm.xlu0 %583, %v567
        %v585 = vpop.permute.xlu0 %584
        %v586 = vlaneseq
        %v587 = vshrl.u32 %v586, 7
        %v588 = vadd.s32 %v587, 24
        %589 = vset.pattern.permute.xlu0 %v588
        %590 = vperm.xlu0 %589, %v567
        %v591 = vpop.permute.xlu0 %590
        %v592 = vlaneseq
        %v593 = vshrl.u32 %v592, 7
        %v594 = vadd.s32 %v593, 32
        %595 = vset.pattern.permute.xlu0 %v594
        %596 = vperm.xlu0 %595, %v567
        %v597 = vpop.permute.xlu0 %596
        %v598 = vlaneseq
        %v599 = vshrl.u32 %v598, 7
        %v600 = vadd.s32 %v599, 40
        %601 = vset.pattern.permute.xlu0 %v600
        %602 = vperm.xlu0 %601, %v567
        %v603 = vpop.permute.xlu0 %602
        %v604 = vlaneseq
        %v605 = vshrl.u32 %v604, 7
        %v606 = vadd.s32 %v605, 48
        %607 = vset.pattern.permute.xlu0 %v606
        %608 = vperm.xlu0 %607, %v567
        %v609 = vpop.permute.xlu0 %608
        %v610 = vlaneseq
        %v611 = vshrl.u32 %v610, 7
        %v612 = vadd.s32 %v611, 56
        %613 = vset.pattern.permute.xlu0 %v612
        %614 = vperm.xlu0 %613, %v567
        %v615 = vpop.permute.xlu0 %614
        %v616 = vmul.f32 %v270, %v524
        %v617 = vmul.f32 %v271, %v524
        %v618 = vmul.f32 %v272, %v530
        %v619 = vmul.f32 %v273, %v530
        %v620 = vmul.f32 %v274, %v536
        %v621 = vmul.f32 %v275, %v536
        %v622 = vmul.f32 %v276, %v542
        %v623 = vmul.f32 %v277, %v542
        %v624 = vmul.f32 %v278, %v548
        %v625 = vmul.f32 %v279, %v548
        %v626 = vmul.f32 %v280, %v554
        %v627 = vmul.f32 %v281, %v554
        %v628 = vmul.f32 %v282, %v560
        %v629 = vmul.f32 %v283, %v560
        %v630 = vmul.f32 %v284, %v566
        %v631 = vmul.f32 %v285, %v566
        %v632 = vmul.f32 %v286, %v573
        %v633 = vmul.f32 %v287, %v573
        %v634 = vmul.f32 %v288, %v579
        %v635 = vmul.f32 %v289, %v579
        %v636 = vmul.f32 %v290, %v585
        %v637 = vmul.f32 %v291, %v585
        %v638 = vmul.f32 %v292, %v591
        %v639 = vmul.f32 %v293, %v591
        %v640 = vmul.f32 %v294, %v597
        %v641 = vmul.f32 %v295, %v597
        %v642 = vmul.f32 %v296, %v603
        %v643 = vmul.f32 %v297, %v603
        %v644 = vmul.f32 %v298, %v609
        %v645 = vmul.f32 %v299, %v609
        %v646 = vmul.f32 %v300, %v615
        %v647 = vmul.f32 %v301, %v615
        %648 = vst [vmem:[%s255] sm:$0xff] %v616
        %649 = vst [vmem:[%s255 + $0x8] sm:$0xff] %v617
        %650 = vst [vmem:[%s255 + $0x10] sm:$0xff] %v618
        %651 = vst [vmem:[%s255 + $0x18] sm:$0xff] %v619
        %652 = vst [vmem:[%s255 + $0x20] sm:$0xff] %v620
        %653 = vst [vmem:[%s255 + $0x28] sm:$0xff] %v621
        %654 = vst [vmem:[%s255 + $0x30] sm:$0xff] %v622
        %655 = vst [vmem:[%s255 + $0x38] sm:$0xff] %v623
        %656 = vst [vmem:[%s255 + $0x40] sm:$0xff] %v624
        %657 = vst [vmem:[%s255 + $0x48] sm:$0xff] %v625
        %658 = vst [vmem:[%s255 + $0x50] sm:$0xff] %v626
        %659 = vst [vmem:[%s255 + $0x58] sm:$0xff] %v627
        %660 = vst [vmem:[%s255 + $0x60] sm:$0xff] %v628
        %661 = vst [vmem:[%s255 + $0x68] sm:$0xff] %v629
        %662 = vst [vmem:[%s255 + $0x70] sm:$0xff] %v630
        %663 = vst [vmem:[%s255 + $0x78] sm:$0xff] %v631
        %664 = vst [vmem:[%s255 + $0x80] sm:$0xff] %v632
        %665 = vst [vmem:[%s255 + $0x88] sm:$0xff] %v633
        %666 = vst [vmem:[%s255 + $0x90] sm:$0xff] %v634
        %667 = vst [vmem:[%s255 + $0x98] sm:$0xff] %v635
        %668 = vst [vmem:[%s255 + $0xa0] sm:$0xff] %v636
        %669 = vst [vmem:[%s255 + $0xa8] sm:$0xff] %v637
        %670 = vst [vmem:[%s255 + $0xb0] sm:$0xff] %v638
        %671 = vst [vmem:[%s255 + $0xb8] sm:$0xff] %v639
        %672 = vst [vmem:[%s255 + $0xc0] sm:$0xff] %v640
        %673 = vst [vmem:[%s255 + $0xc8] sm:$0xff] %v641
        %674 = vst [vmem:[%s255 + $0xd0] sm:$0xff] %v642
        %675 = vst [vmem:[%s255 + $0xd8] sm:$0xff] %v643
        %676 = vst [vmem:[%s255 + $0xe0] sm:$0xff] %v644
        %677 = vst [vmem:[%s255 + $0xe8] sm:$0xff] %v645
        %678 = vst [vmem:[%s255 + $0xf0] sm:$0xff] %v646
        %679 = vst [vmem:[%s255 + $0xf8] sm:$0xff] %v647
        %s680 = sand.u32 %s140, 1
        %s681 = scalar_lea.sflag [#allocation4], %s680
        %s682 = sand.u32 %s140, 1
        %s683 = smul.addr %s682, 256
        %s684 = scalar_lea.vmem [#allocation5], %s683
        // Predicated region
        $region45: #{tpu_custom_call.1} parent=39 // pred_check
          %p685 = pneg %p150
        $region46: #{tpu_custom_call.1} parent=39 // pred_check_branch
          %687 = sbr.rel (%p685) target = $region48
        $region47: #{tpu_custom_call.1} parent=39 // pred_region
          %s688 = smul.u32 2, %s22
          %s689 = ssub.s32 5, %s688
          %p690 = scmp.lt.s32.totalorder %s689, 2
          %s691 = scalar_select %p690, %s689, 2
          %s692 = smul.u32 8, %s691
          %s693 = smul.u32 %s692, 8
          %s694 = smul.u32 %s693, 2
          %s695 = ssub.s32 256, %s694
          %s696 = sshll.u32 %s695, 4
          %697 = vsyncadd %s681, %s696
          %p698 = scmp.ne.s32.totalorder 0, %s694
          %s699 = smul.addr %s688, 16
          %s700 = smul.addr %s699, 8
          %s701 = scalar_lea.hbm %s5, %s700
          %s702 = smul.u32 %s691, 8
          %s703 = smul.u32 16, %s702
          %s704 = sshll.u32 %s684, 4
          %s705 = int_to_ptr.vmem [resolvable:$true] %s704
          %s706 = sshll.u32 %s701, 4
          %s707 = int_to_ptr.hbm [resolvable:$true] %s706
          %s708 = sshll.u32 %s703, 4
          %712 = dma.vmem_to_hbm [thread:$0]  (%p698), %s705, %s708, %s707, %s681, 256, 256, 16
        $region48: #{tpu_custom_call.1} parent=39 // pred_fallthru
          _
      $region40: #{tpu_custom_call.1} parent=5 // pred_fallthru
        _
      %p713 = scmp.le.s32.totalorder 2, %s17
      // Predicated region
      $region49: #{tpu_custom_call.1} parent=5 // pred_check
        %p714 = pneg %p713
      $region50: #{tpu_custom_call.1} parent=5 // pred_check_branch
        %716 = sbr.rel (%p714) target = $region52
      $region51: #{tpu_custom_call.1} parent=5 // pred_region
        %s717 = ssub.s32 %s17, 2
        // Predicated region
        $region53: #{tpu_custom_call.1} parent=51 // pred_check
          %p718 = pneg %p156
        $region54: #{tpu_custom_call.1} parent=51 // pred_check_branch
          %720 = sbr.rel (%p718) target = $region56
        $region55: #{tpu_custom_call.1} parent=51 // pred_region
          %s721 = sand.u32 %s141, 1
          %s722 = scalar_lea.sflag [#allocation4], %s721
          %s723 = sand.u32 %s141, 1
          %s724 = smul.addr %s723, 256
          %s725 = scalar_lea.vmem [#allocation5], %s724
          %727 = dma.done %s722, 4096
        $region56: #{tpu_custom_call.1} parent=51 // pred_fallthru
          _
      $region52: #{tpu_custom_call.1} parent=5 // pred_fallthru
        _
    $region6: #{tpu_custom_call.1} parent=1 // loop_footer
      %s21 = sadd.s32 1, %s17
    $region7: #{tpu_custom_call.1} parent=1 // loop_footer_branch
      %16 = sbr.rel target = $region3
    $region8: #{tpu_custom_call.1} parent=1 // loop_exit
      _
    %728 = vsyncpa [#allocation3], 1
    %s729 = scalar_lea.sflag [#allocation3], 1
    %730 = vsyncpa %s729, 1
    %731 = vsyncpa [#allocation4], 1
    %s732 = scalar_lea.sflag [#allocation4], 1
    %733 = vsyncpa %s732, 1

</llo_original>
